<compile_context>
chip_gen: v6e
topology: v6e:2x2x1
jax: 0.10.0
libtpu: 0.0.40
codegen_flags: <defaults>
</compile_context>

<pallas_src>
import jax
import jax.numpy as jnp
from jax.experimental import pallas as pl
from jax.experimental.pallas import tpu as pltpu

OBS_DIM = 614
ACTION_DIM = 290
H1 = 256
H2 = 128

BM_CAP = 1024  # max batch rows per grid step


def _round_up(x, m):
    return (x + m - 1) // m * m


def mlp_kernel(x_ref, w1_ref, b1_ref, w2_ref, b2_ref, w3_ref, b3_ref, o_ref):
    """Fused 3-layer MLP: relu(relu(x@W1+b1)@W2+b2)@W3+b3.
    MXU operands are bf16; accumulation, bias add and ReLU in f32."""
    x = x_ref[...].astype(jnp.bfloat16)
    h1 = jnp.dot(x, w1_ref[...], preferred_element_type=jnp.float32) + b1_ref[...]
    h1 = jnp.maximum(h1, 0.0)
    h2 = jnp.dot(h1.astype(jnp.bfloat16), w2_ref[...],
                 preferred_element_type=jnp.float32) + b2_ref[...]
    h2 = jnp.maximum(h2, 0.0)
    o = jnp.dot(h2.astype(jnp.bfloat16), w3_ref[...],
                preferred_element_type=jnp.float32) + b3_ref[...]
    o_ref[...] = o.astype(o_ref.dtype)


def prepare_params(w1, b1, w2, b2, w3, b3):
    """One-time param prep (outside the per-call path).
    Weights in [in, out] layout -> bf16 for the MXU; biases -> f32 [1, out]."""
    return (w1.astype(jnp.bfloat16), b1.reshape(1, H1).astype(jnp.float32),
            w2.astype(jnp.bfloat16), b2.reshape(1, H2).astype(jnp.float32),
            w3.astype(jnp.bfloat16), b3.reshape(1, ACTION_DIM).astype(jnp.float32))


@jax.jit
def dqn_forward(x, w1, b1, w2, b2, w3, b3):
    """x: [B, 614] f32, params from prepare_params() -> [B, 290] f32."""
    B = x.shape[0]
    B8 = _round_up(max(B, 8), 8)
    BM = min(B8, BM_CAP)
    B_pad = _round_up(B, BM)

    # Only the (cheap) batch axis is ever padded; feature axes are unpadded.
    if B_pad != B:
        x_in = jnp.zeros((B_pad, OBS_DIM), x.dtype).at[:B, :].set(x)
    else:
        x_in = x

    grid = (B_pad // BM,)

    out = pl.pallas_call(
        mlp_kernel,
        out_shape=jax.ShapeDtypeStruct((B_pad, ACTION_DIM), jnp.float32),
        grid_spec=pltpu.PrefetchScalarGridSpec(
            num_scalar_prefetch=0,
            grid=grid,
            in_specs=[
                pl.BlockSpec((BM, OBS_DIM), lambda i: (i, 0)),      # x tile
                pl.BlockSpec((OBS_DIM, H1), lambda i: (0, 0)),      # W1 (resident)
                pl.BlockSpec((1, H1), lambda i: (0, 0)),            # b1
                pl.BlockSpec((H1, H2), lambda i: (0, 0)),           # W2
                pl.BlockSpec((1, H2), lambda i: (0, 0)),            # b2
                pl.BlockSpec((H2, ACTION_DIM), lambda i: (0, 0)),   # W3
                pl.BlockSpec((1, ACTION_DIM), lambda i: (0, 0)),    # b3
            ],
            out_specs=pl.BlockSpec((BM, ACTION_DIM), lambda i: (i, 0)),
        ),
        compiler_params=pltpu.CompilerParams(
            dimension_semantics=("parallel",),
            vmem_limit_bytes=48 * 1024 * 1024,
        ),
    )(x_in, w1, b1, w2, b2, w3, b3)

    if B_pad != B:
        out = out[:B, :]
    return out


def init_params(key):
    """Deterministic Xavier-uniform weights (matching nn.init.xavier_uniform_),
    zero biases. Weights returned in [in, out] layout, f32."""
    k1, k2, k3 = jax.random.split(key, 3)

    def xavier(k, fan_in, fan_out):
        bound = jnp.sqrt(6.0 / (fan_in + fan_out))
        return jax.random.uniform(k, (fan_in, fan_out), jnp.float32, -bound, bound)

    w1 = xavier(k1, OBS_DIM, H1)
    w2 = xavier(k2, H1, H2)
    w3 = xavier(k3, H2, ACTION_DIM)
    b1 = jnp.zeros((H1,), jnp.float32)
    b2 = jnp.zeros((H2,), jnp.float32)
    b3 = jnp.zeros((ACTION_DIM,), jnp.float32)
    return w1, b1, w2, b2, w3, b3


def reference_forward(x, w1, b1, w2, b2, w3, b3):
    h1 = jnp.maximum(x @ w1 + b1, 0.0)
    h2 = jnp.maximum(h1 @ w2 + b2, 0.0)
    return h2 @ w3 + b3


if __name__ == "__main__":
    key = jax.random.PRNGKey(0)
    kp, kx = jax.random.split(key)

    raw_params = init_params(kp)          # f32, [in, out] layout
    params = prepare_params(*raw_params)  # done once, outside the hot path

    batch = 2
    x = jax.random.normal(kx, (batch, OBS_DIM), jnp.float32)

    out = dqn_forward(x, *params)
    out = jax.block_until_ready(out)

    ref = reference_forward(x, *raw_params)
    assert out.shape == (batch, ACTION_DIM), out.shape
    # bf16 MXU operands (f32 accumulation) -> looser tolerance vs the f32 reference.
    assert jnp.allclose(out, ref, atol=5e-2, rtol=5e-2), (
        float(jnp.max(jnp.abs(out - ref))))

    print("KERNEL_OK")
</pallas_src>

<mosaic_0001>
module attributes {stable_mosaic.version = 11 : i64} {
  func.func @mlp_kernel(%arg0: i32, %arg1: memref<8x614xf32, #tpu.memory_space<vmem>>, %arg2: memref<614x256xbf16, #tpu.memory_space<vmem>>, %arg3: memref<1x256xf32, #tpu.memory_space<vmem>>, %arg4: memref<256x128xbf16, #tpu.memory_space<vmem>>, %arg5: memref<1x128xf32, #tpu.memory_space<vmem>>, %arg6: memref<128x290xbf16, #tpu.memory_space<vmem>>, %arg7: memref<1x290xf32, #tpu.memory_space<vmem>>, %arg8: memref<8x290xf32, #tpu.memory_space<vmem>>) attributes {dimension_semantics = [#tpu.dimension_semantics<parallel>], iteration_bounds = array<i64: 1>, scalar_prefetch = 0 : i64, scratch_operands = 0 : i64, tpu.core_type = #tpu.core_type<tc>, window_params = [{transform_indices = @transform_0, window_bounds = array<i64: 8, 614>}, {pipeline_mode = #tpu.pipeline_mode<synchronous>, transform_indices = @transform_1, window_bounds = array<i64: 614, 256>}, {pipeline_mode = #tpu.pipeline_mode<synchronous>, transform_indices = @transform_2, window_bounds = array<i64: 1, 256>}, {pipeline_mode = #tpu.pipeline_mode<synchronous>, transform_indices = @transform_3, window_bounds = array<i64: 256, 128>}, {pipeline_mode = #tpu.pipeline_mode<synchronous>, transform_indices = @transform_4, window_bounds = array<i64: 1, 128>}, {pipeline_mode = #tpu.pipeline_mode<synchronous>, transform_indices = @transform_5, window_bounds = array<i64: 128, 290>}, {pipeline_mode = #tpu.pipeline_mode<synchronous>, transform_indices = @transform_6, window_bounds = array<i64: 1, 290>}, {transform_indices = @transform_7, window_bounds = array<i64: 8, 290>}]} {
    %c0 = arith.constant 0 : index
    %c0_0 = arith.constant 0 : index
    %0 = vector.load %arg1[%c0, %c0_0] : memref<8x614xf32, #tpu.memory_space<vmem>>, vector<8x614xf32>
    %1 = arith.truncf %0 : vector<8x614xf32> to vector<8x614xbf16>
    %c0_1 = arith.constant 0 : index
    %c0_2 = arith.constant 0 : index
    %2 = vector.load %arg2[%c0_1, %c0_2] : memref<614x256xbf16, #tpu.memory_space<vmem>>, vector<614x256xbf16>
    %cst = arith.constant dense<0.000000e+00> : vector<8x256xf32>
    %3 = tpu.matmul %1, %2, %cst {dimension_numbers = #tpu.dot_dimension_numbers<[1], [0], [0], [1], [0, 0, 1, 1], [], []>} : vector<8x614xbf16>, vector<614x256xbf16>, vector<8x256xf32> -> vector<8x256xf32>
    %c0_3 = arith.constant 0 : index
    %c0_4 = arith.constant 0 : index
    %4 = vector.load %arg3[%c0_3, %c0_4] : memref<1x256xf32, #tpu.memory_space<vmem>>, vector<1x256xf32>
    %5 = vector.broadcast %4 : vector<1x256xf32> to vector<8x256xf32>
    %6 = arith.addf %3, %5 : vector<8x256xf32>
    %cst_5 = arith.constant 0.000000e+00 : f32
    %7 = vector.broadcast %cst_5 : f32 to vector<8x256xf32>
    %8 = arith.maximumf %6, %7 : vector<8x256xf32>
    %9 = arith.truncf %8 : vector<8x256xf32> to vector<8x256xbf16>
    %c0_6 = arith.constant 0 : index
    %c0_7 = arith.constant 0 : index
    %10 = vector.load %arg4[%c0_6, %c0_7] : memref<256x128xbf16, #tpu.memory_space<vmem>>, vector<256x128xbf16>
    %cst_8 = arith.constant dense<0.000000e+00> : vector<8x128xf32>
    %11 = tpu.matmul %9, %10, %cst_8 {dimension_numbers = #tpu.dot_dimension_numbers<[1], [0], [0], [1], [0, 0, 1, 1], [], []>} : vector<8x256xbf16>, vector<256x128xbf16>, vector<8x128xf32> -> vector<8x128xf32>
    %c0_9 = arith.constant 0 : index
    %c0_10 = arith.constant 0 : index
    %12 = vector.load %arg5[%c0_9, %c0_10] : memref<1x128xf32, #tpu.memory_space<vmem>>, vector<1x128xf32>
    %13 = vector.broadcast %12 : vector<1x128xf32> to vector<8x128xf32>
    %14 = arith.addf %11, %13 : vector<8x128xf32>
    %cst_11 = arith.constant 0.000000e+00 : f32
    %15 = vector.broadcast %cst_11 : f32 to vector<8x128xf32>
    %16 = arith.maximumf %14, %15 : vector<8x128xf32>
    %17 = arith.truncf %16 : vector<8x128xf32> to vector<8x128xbf16>
    %c0_12 = arith.constant 0 : index
    %c0_13 = arith.constant 0 : index
    %18 = vector.load %arg6[%c0_12, %c0_13] : memref<128x290xbf16, #tpu.memory_space<vmem>>, vector<128x290xbf16>
    %cst_14 = arith.constant dense<0.000000e+00> : vector<8x290xf32>
    %19 = tpu.matmul %17, %18, %cst_14 {dimension_numbers = #tpu.dot_dimension_numbers<[1], [0], [0], [1], [0, 0, 1, 1], [], []>} : vector<8x128xbf16>, vector<128x290xbf16>, vector<8x290xf32> -> vector<8x290xf32>
    %c0_15 = arith.constant 0 : index
    %c0_16 = arith.constant 0 : index
    %20 = vector.load %arg7[%c0_15, %c0_16] : memref<1x290xf32, #tpu.memory_space<vmem>>, vector<1x290xf32>
    %21 = vector.broadcast %20 : vector<1x290xf32> to vector<8x290xf32>
    %22 = arith.addf %19, %21 : vector<8x290xf32>
    %c0_17 = arith.constant 0 : index
    %c0_18 = arith.constant 0 : index
    %23 = vector.load %arg8[%c0_17, %c0_18] : memref<8x290xf32, #tpu.memory_space<vmem>>, vector<8x290xf32>
    tpu.vector_store %arg8[%c0_17, %c0_18], %22 {strides = array<i32>} : memref<8x290xf32, #tpu.memory_space<vmem>>, vector<8x290xf32>,
    return
  }
  func.func @transform_0(%arg0: i32) -> (i32, i32) {
    %c0_i32 = arith.constant 0 : i32
    %c0_i32_0 = arith.constant 0 : i32
    return %arg0, %c0_i32 : i32, i32
  }
  func.func @transform_1(%arg0: i32) -> (i32, i32) {
    %c0_i32 = arith.constant 0 : i32
    %c0_i32_0 = arith.constant 0 : i32
    %c0_i32_1 = arith.constant 0 : i32
    return %c0_i32, %c0_i32_0 : i32, i32
  }
  func.func @transform_2(%arg0: i32) -> (i32, i32) {
    %c0_i32 = arith.constant 0 : i32
    %c0_i32_0 = arith.constant 0 : i32
    %c0_i32_1 = arith.constant 0 : i32
    return %c0_i32, %c0_i32_0 : i32, i32
  }
  func.func @transform_3(%arg0: i32) -> (i32, i32) {
    %c0_i32 = arith.constant 0 : i32
    %c0_i32_0 = arith.constant 0 : i32
    %c0_i32_1 = arith.constant 0 : i32
    return %c0_i32, %c0_i32_0 : i32, i32
  }
  func.func @transform_4(%arg0: i32) -> (i32, i32) {
    %c0_i32 = arith.constant 0 : i32
    %c0_i32_0 = arith.constant 0 : i32
    %c0_i32_1 = arith.constant 0 : i32
    return %c0_i32, %c0_i32_0 : i32, i32
  }
  func.func @transform_5(%arg0: i32) -> (i32, i32) {
    %c0_i32 = arith.constant 0 : i32
    %c0_i32_0 = arith.constant 0 : i32
    %c0_i32_1 = arith.constant 0 : i32
    return %c0_i32, %c0_i32_0 : i32, i32
  }
  func.func @transform_6(%arg0: i32) -> (i32, i32) {
    %c0_i32 = arith.constant 0 : i32
    %c0_i32_0 = arith.constant 0 : i32
    %c0_i32_1 = arith.constant 0 : i32
    return %c0_i32, %c0_i32_0 : i32, i32
  }
  func.func @transform_7(%arg0: i32) -> (i32, i32) {
    %c0_i32 = arith.constant 0 : i32
    %c0_i32_0 = arith.constant 0 : i32
    return %arg0, %c0_i32 : i32, i32
  }
}

</mosaic_0001>

<llo_original>
// kernel: dqn_forward.1
$region0: #{dqn_forward.1}
  #allocation0 [shape = 'u32[]', space=smem, size = 0x4, offset = 0x4, fixed_abs, tag = 'smem constant byte address 0x4 - core index']
  #allocation1 [shape = 'u32[144,128]{1,0:T(1,128)}', space=vmem, size = 0x12000, scoped, tag = 'internal scratch']
  %s0 = inlined_call_operand.vmem [shape: f32[8,614], index: 0, kind: input, shape index: {}]
  %s1 = inlined_call_operand.hbm [shape: bf16[614,256], index: 1, kind: input, shape index: {}]
  %s2 = inlined_call_operand.vmem [shape: f32[1,256], index: 2, kind: input, shape index: {}]
  %s3 = inlined_call_operand.vmem [shape: bf16[256,128], index: 3, kind: input, shape index: {}]
  %s4 = inlined_call_operand.vmem [shape: f32[1,128], index: 4, kind: input, shape index: {}]
  %s5 = inlined_call_operand.vmem [shape: bf16[128,290], index: 5, kind: input, shape index: {}]
  %s6 = inlined_call_operand.vmem [shape: f32[1,290], index: 6, kind: input, shape index: {}]
  %s7 = inlined_call_operand.vmem [shape: f32[8,290], index: 7, kind: output, shape index: {}]
  %s8 = sld [smem:[#allocation0]]
  $region42: #{dqn_forward.1} parent=0
    _
  %s10 = ssub.s32 1, %s8
  %s11 = scalar_select 0, %s10, %s8
  $region1: #{dqn_forward.1} parent=0
    #allocation2 [shape = 'u8[315392]{0}', space=vmem, size = 0x4d000, scoped, tag = 'input window, operand 1, single buffered']
    #allocation3 [shape = 's32[1]{0}', space=sflag, size = 0x4, scoped, tag = 'scoped memory for dqn_forward.1']
    %12 = vsyncpa [#allocation3], 0
    // Predicated region
    $region2: #{dqn_forward.1} parent=1 // pred_check
      _
    $region3: #{dqn_forward.1} parent=1 // pred_check_branch
      %14 = sbr.rel (0) target = $region5
    $region4: #{dqn_forward.1} parent=1 // pred_region
      _
    $region5: #{dqn_forward.1} parent=1 // pred_fallthru
      _
    // Predicated region
    $region6: #{dqn_forward.1} parent=1 // pred_check
      _
    $region7: #{dqn_forward.1} parent=1 // pred_check_branch
      %16 = sbr.rel (0) target = $region9
    $region8: #{dqn_forward.1} parent=1 // pred_region
      %s18 = ssub.s32 9856, 9856
      %19 = vsyncadd [#allocation3], %s18
      %s20 = sshll.u32 [#allocation2], 4
      %s21 = int_to_ptr.vmem [resolvable:$true] %s20
      %26 = dma.hbm_to_vmem [thread:$0]  %s1, 9856, %s21, [#allocation3], 128, 128, 8
    $region9: #{dqn_forward.1} parent=1 // pred_fallthru
      _
    // Predicated region
    $region10: #{dqn_forward.1} parent=1 // pred_check
      _
    $region11: #{dqn_forward.1} parent=1 // pred_check_branch
      %28 = sbr.rel (0) target = $region13
    $region12: #{dqn_forward.1} parent=1 // pred_region
      _
    $region13: #{dqn_forward.1} parent=1 // pred_fallthru
      _
    // Predicated region
    $region14: #{dqn_forward.1} parent=1 // pred_check
      _
    $region15: #{dqn_forward.1} parent=1 // pred_check_branch
      %30 = sbr.rel (0) target = $region17
    $region16: #{dqn_forward.1} parent=1 // pred_region
      _
    $region17: #{dqn_forward.1} parent=1 // pred_fallthru
      _
    // Predicated region
    $region18: #{dqn_forward.1} parent=1 // pred_check
      _
    $region19: #{dqn_forward.1} parent=1 // pred_check_branch
      %32 = sbr.rel (0) target = $region21
    $region20: #{dqn_forward.1} parent=1 // pred_region
      _
    $region21: #{dqn_forward.1} parent=1 // pred_fallthru
      _
    // Predicated region
    $region22: #{dqn_forward.1} parent=1 // pred_check
      _
    $region23: #{dqn_forward.1} parent=1 // pred_check_branch
      %34 = sbr.rel (0) target = $region25
    $region24: #{dqn_forward.1} parent=1 // pred_region
      _
    $region25: #{dqn_forward.1} parent=1 // pred_fallthru
      _
    // Predicated region
    $region26: #{dqn_forward.1} parent=1 // pred_check
      _
    $region27: #{dqn_forward.1} parent=1 // pred_check_branch
      %36 = sbr.rel (0) target = $region29
    $region28: #{dqn_forward.1} parent=1 // pred_region
      _
    $region29: #{dqn_forward.1} parent=1 // pred_fallthru
      _
    // Predicated region
    $region30: #{dqn_forward.1} parent=1 // pred_check
      _
    $region31: #{dqn_forward.1} parent=1 // pred_check_branch
      %38 = sbr.rel (0) target = $region33
    $region32: #{dqn_forward.1} parent=1 // pred_region
      %39 = dma.done [#allocation3], 9856
    $region33: #{dqn_forward.1} parent=1 // pred_fallthru
      _
    %v41 = vld [vmem:[%s0] sm:$0xff]
    %v42 = vld [vmem:[%s0 + $0x8] sm:$0xff]
    %v43 = vld [vmem:[%s0 + $0x10] sm:$0xff]
    %v44 = vld [vmem:[%s0 + $0x18] sm:$0xff]
    %v45 = vld [vmem:[%s0 + $0x20] sm:$0xff]
    %v46 = vpack.c.bf16 %v41, %v41
    %v47 = vpack.c.bf16 %v42, %v42
    %v48 = vpack.c.bf16 %v43, %v43
    %v49 = vpack.c.bf16 %v44, %v44
    %v50 = vpack.c.bf16 %v45, %v45
    %v51 = vld [vmem:[#allocation2] sm:$0xff]
    %v52 = vld [vmem:[#allocation2 + $0x8] sm:$0xff]
    %v53 = vld [vmem:[#allocation2 + $0x10] sm:$0xff]
    %v54 = vld [vmem:[#allocation2 + $0x18] sm:$0xff]
    %v55 = vld [vmem:[#allocation2 + $0x20] sm:$0xff]
    %v56 = vld [vmem:[#allocation2 + $0x28] sm:$0xff]
    %v57 = vld [vmem:[#allocation2 + $0x30] sm:$0xff]
    %v58 = vld [vmem:[#allocation2 + $0x38] sm:$0xff]
    %v59 = vld [vmem:[#allocation2 + $0x40] sm:$0xff]
    %v60 = vld [vmem:[#allocation2 + $0x48] sm:$0xff]
    %v61 = vld [vmem:[#allocation2 + $0x50] sm:$0xff]
    %v62 = vld [vmem:[#allocation2 + $0x58] sm:$0xff]
    %v63 = vld [vmem:[#allocation2 + $0x60] sm:$0xff]
    %v64 = vld [vmem:[#allocation2 + $0x68] sm:$0xff]
    %v65 = vld [vmem:[#allocation2 + $0x70] sm:$0xff]
    %v66 = vld [vmem:[#allocation2 + $0x78] sm:$0xff]
    %v67 = vld [vmem:[#allocation2 + $0x80] sm:$0xff]
    %v68 = vld [vmem:[#allocation2 + $0x88] sm:$0xff]
    %v69 = vld [vmem:[#allocation2 + $0x90] sm:$0xff]
    %v70 = vld [vmem:[#allocation2 + $0x98] sm:$0xff]
    %v71 = vld [vmem:[#allocation2 + $0xa0] sm:$0xff]
    %v72 = vld [vmem:[#allocation2 + $0xa8] sm:$0xff]
    %v73 = vld [vmem:[#allocation2 + $0xb0] sm:$0xff]
    %v74 = vld [vmem:[#allocation2 + $0xb8] sm:$0xff]
    %v75 = vld [vmem:[#allocation2 + $0xc0] sm:$0xff]
    %v76 = vld [vmem:[#allocation2 + $0xc8] sm:$0xff]
    %v77 = vld [vmem:[#allocation2 + $0xd0] sm:$0xff]
    %v78 = vld [vmem:[#allocation2 + $0xd8] sm:$0xff]
    %v79 = vld [vmem:[#allocation2 + $0xe0] sm:$0xff]
    %v80 = vld [vmem:[#allocation2 + $0xe8] sm:$0xff]
    %v81 = vld [vmem:[#allocation2 + $0xf0] sm:$0xff]
    %v82 = vld [vmem:[#allocation2 + $0xf8] sm:$0xff]
    %v83 = vld [vmem:[#allocation2 + $0x100] sm:$0xff]
    %v84 = vld [vmem:[#allocation2 + $0x108] sm:$0xff]
    %v85 = vld [vmem:[#allocation2 + $0x110] sm:$0xff]
    %v86 = vld [vmem:[#allocation2 + $0x118] sm:$0xff]
    %v87 = vld [vmem:[#allocation2 + $0x120] sm:$0xff]
    %v88 = vld [vmem:[#allocation2 + $0x128] sm:$0xff]
    %v89 = vld [vmem:[#allocation2 + $0x130] sm:$0xff]
    %v90 = vld [vmem:[#allocation2 + $0x138] sm:$0xff]
    %v91 = vld [vmem:[#allocation2 + $0x140] sm:$0xff]
    %v92 = vld [vmem:[#allocation2 + $0x148] sm:$0xff]
    %v93 = vld [vmem:[#allocation2 + $0x150] sm:$0xff]
    %v94 = vld [vmem:[#allocation2 + $0x158] sm:$0xff]
    %v95 = vld [vmem:[#allocation2 + $0x160] sm:$0xff]
    %v96 = vld [vmem:[#allocation2 + $0x168] sm:$0xff]
    %v97 = vld [vmem:[#allocation2 + $0x170] sm:$0xff]
    %v98 = vld [vmem:[#allocation2 + $0x178] sm:$0xff]
    %v99 = vld [vmem:[#allocation2 + $0x180] sm:$0xff]
    %v100 = vld [vmem:[#allocation2 + $0x188] sm:$0xff]
    %v101 = vld [vmem:[#allocation2 + $0x190] sm:$0xff]
    %v102 = vld [vmem:[#allocation2 + $0x198] sm:$0xff]
    %v103 = vld [vmem:[#allocation2 + $0x1a0] sm:$0xff]
    %v104 = vld [vmem:[#allocation2 + $0x1a8] sm:$0xff]
    %v105 = vld [vmem:[#allocation2 + $0x1b0] sm:$0xff]
    %v106 = vld [vmem:[#allocation2 + $0x1b8] sm:$0xff]
    %v107 = vld [vmem:[#allocation2 + $0x1c0] sm:$0xff]
    %v108 = vld [vmem:[#allocation2 + $0x1c8] sm:$0xff]
    %v109 = vld [vmem:[#allocation2 + $0x1d0] sm:$0xff]
    %v110 = vld [vmem:[#allocation2 + $0x1d8] sm:$0xff]
    %v111 = vld [vmem:[#allocation2 + $0x1e0] sm:$0xff]
    %v112 = vld [vmem:[#allocation2 + $0x1e8] sm:$0xff]
    %v113 = vld [vmem:[#allocation2 + $0x1f0] sm:$0xff]
    %v114 = vld [vmem:[#allocation2 + $0x1f8] sm:$0xff]
    %v115 = vld [vmem:[#allocation2 + $0x200] sm:$0xff]
    %v116 = vld [vmem:[#allocation2 + $0x208] sm:$0xff]
    %v117 = vld [vmem:[#allocation2 + $0x210] sm:$0xff]
    %v118 = vld [vmem:[#allocation2 + $0x218] sm:$0xff]
    %v119 = vld [vmem:[#allocation2 + $0x220] sm:$0xff]
    %v120 = vld [vmem:[#allocation2 + $0x228] sm:$0xff]
    %v121 = vld [vmem:[#allocation2 + $0x230] sm:$0xff]
    %v122 = vld [vmem:[#allocation2 + $0x238] sm:$0xff]
    %v123 = vld [vmem:[#allocation2 + $0x240] sm:$0xff]
    %v124 = vld [vmem:[#allocation2 + $0x248] sm:$0xff]
    %v125 = vld [vmem:[#allocation2 + $0x250] sm:$0xff]
    %v126 = vld [vmem:[#allocation2 + $0x258] sm:$0xff]
    %v127 = vld [vmem:[#allocation2 + $0x260] sm:$0x77]
    %v128 = vld [vmem:[%s2] sm:$0x3]
    %v130 = vlaneseq
    %v131 = vshrl.u32 %v130, 7
    %v132 = vsub.s32 0, %v131
    %v133 = vrot.slane %v128, %v132
    %v134 = vlaneseq
    %v135 = vshrl.u32 %v134, 7
    %v136 = vsub.s32 1, %v135
    %v137 = vrot.slane %v128, %v136
    %v217 = vunpack.c.l.b16 %v51
    %v218 = vunpack.c.h.b16 %v51
    %v219 = vunpack.c.l.b16 %v52
    %v220 = vunpack.c.h.b16 %v52
    %v221 = vunpack.c.l.b16 %v53
    %v222 = vunpack.c.h.b16 %v53
    %v223 = vunpack.c.l.b16 %v54
    %v224 = vunpack.c.h.b16 %v54
    %v225 = vunpack.c.l.b16 %v55
    %v226 = vunpack.c.h.b16 %v55
    %v227 = vunpack.c.l.b16 %v56
    %v228 = vunpack.c.h.b16 %v56
    %v229 = vunpack.c.l.b16 %v57
    %v230 = vunpack.c.h.b16 %v57
    %v231 = vunpack.c.l.b16 %v58
    %v232 = vunpack.c.h.b16 %v58
    %v233 = vunpack.c.l.b16 %v59
    %v234 = vunpack.c.h.b16 %v59
    %v235 = vunpack.c.l.b16 %v60
    %v236 = vunpack.c.h.b16 %v60
    %v237 = vunpack.c.l.b16 %v61
    %v238 = vunpack.c.h.b16 %v61
    %v239 = vunpack.c.l.b16 %v62
    %v240 = vunpack.c.h.b16 %v62
    %v241 = vunpack.c.l.b16 %v63
    %v242 = vunpack.c.h.b16 %v63
    %v243 = vunpack.c.l.b16 %v64
    %v244 = vunpack.c.h.b16 %v64
    %v245 = vunpack.c.l.b16 %v65
    %v246 = vunpack.c.h.b16 %v65
    %v247 = vunpack.c.l.b16 %v66
    %v248 = vunpack.c.h.b16 %v66
    %v249 = vunpack.c.l.b16 %v67
    %v250 = vunpack.c.h.b16 %v67
    %v251 = vunpack.c.l.b16 %v68
    %v252 = vunpack.c.h.b16 %v68
    %v253 = vunpack.c.l.b16 %v69
    %v254 = vunpack.c.h.b16 %v69
    %v255 = vunpack.c.l.b16 %v70
    %v256 = vunpack.c.h.b16 %v70
    %v257 = vunpack.c.l.b16 %v71
    %v258 = vunpack.c.h.b16 %v71
    %v259 = vunpack.c.l.b16 %v72
    %v260 = vunpack.c.h.b16 %v72
    %v261 = vunpack.c.l.b16 %v73
    %v262 = vunpack.c.h.b16 %v73
    %v263 = vunpack.c.l.b16 %v74
    %v264 = vunpack.c.h.b16 %v74
    %v265 = vunpack.c.l.b16 %v75
    %v266 = vunpack.c.h.b16 %v75
    %v267 = vunpack.c.l.b16 %v76
    %v268 = vunpack.c.h.b16 %v76
    %v269 = vunpack.c.l.b16 %v77
    %v270 = vunpack.c.h.b16 %v77
    %v271 = vunpack.c.l.b16 %v78
    %v272 = vunpack.c.h.b16 %v78
    %v273 = vunpack.c.l.b16 %v79
    %v274 = vunpack.c.h.b16 %v79
    %v275 = vunpack.c.l.b16 %v80
    %v276 = vunpack.c.h.b16 %v80
    %v277 = vunpack.c.l.b16 %v81
    %v278 = vunpack.c.h.b16 %v81
    %v279 = vunpack.c.l.b16 %v82
    %v280 = vunpack.c.h.b16 %v82
    %v281 = vunpack.c.l.b16 %v83
    %v282 = vunpack.c.h.b16 %v83
    %v283 = vunpack.c.l.b16 %v84
    %v284 = vunpack.c.h.b16 %v84
    %v285 = vunpack.c.l.b16 %v85
    %v286 = vunpack.c.h.b16 %v85
    %v287 = vunpack.c.l.b16 %v86
    %v288 = vunpack.c.h.b16 %v86
    %v289 = vunpack.c.l.b16 %v87
    %v290 = vunpack.c.h.b16 %v87
    %v291 = vunpack.c.l.b16 %v88
    %v292 = vunpack.c.h.b16 %v88
    %v293 = vunpack.c.l.b16 %v89
    %v294 = vunpack.c.h.b16 %v89
    %v295 = vunpack.c.l.b16 %v90
    %v296 = vunpack.c.h.b16 %v90
    %v297 = vunpack.c.l.b16 %v91
    %v298 = vunpack.c.h.b16 %v91
    %v299 = vunpack.c.l.b16 %v92
    %v300 = vunpack.c.h.b16 %v92
    %v301 = vunpack.c.l.b16 %v93
    %v302 = vunpack.c.h.b16 %v93
    %v303 = vunpack.c.l.b16 %v94
    %v304 = vunpack.c.h.b16 %v94
    %v305 = vunpack.c.l.b16 %v95
    %v306 = vunpack.c.h.b16 %v95
    %v307 = vunpack.c.l.b16 %v96
    %v308 = vunpack.c.h.b16 %v96
    %v309 = vunpack.c.l.b16 %v97
    %v310 = vunpack.c.h.b16 %v97
    %v311 = vunpack.c.l.b16 %v98
    %v312 = vunpack.c.h.b16 %v98
    %v313 = vunpack.c.l.b16 %v99
    %v314 = vunpack.c.h.b16 %v99
    %v315 = vunpack.c.l.b16 %v100
    %v316 = vunpack.c.h.b16 %v100
    %v317 = vunpack.c.l.b16 %v101
    %v318 = vunpack.c.h.b16 %v101
    %v319 = vunpack.c.l.b16 %v102
    %v320 = vunpack.c.h.b16 %v102
    %v321 = vunpack.c.l.b16 %v103
    %v322 = vunpack.c.h.b16 %v103
    %v323 = vunpack.c.l.b16 %v104
    %v324 = vunpack.c.h.b16 %v104
    %v325 = vunpack.c.l.b16 %v105
    %v326 = vunpack.c.h.b16 %v105
    %v327 = vunpack.c.l.b16 %v106
    %v328 = vunpack.c.h.b16 %v106
    %v329 = vunpack.c.l.b16 %v107
    %v330 = vunpack.c.h.b16 %v107
    %v331 = vunpack.c.l.b16 %v108
    %v332 = vunpack.c.h.b16 %v108
    %v333 = vunpack.c.l.b16 %v109
    %v334 = vunpack.c.h.b16 %v109
    %v335 = vunpack.c.l.b16 %v110
    %v336 = vunpack.c.h.b16 %v110
    %v337 = vunpack.c.l.b16 %v111
    %v338 = vunpack.c.h.b16 %v111
    %v339 = vunpack.c.l.b16 %v112
    %v340 = vunpack.c.h.b16 %v112
    %v341 = vunpack.c.l.b16 %v113
    %v342 = vunpack.c.h.b16 %v113
    %v343 = vunpack.c.l.b16 %v114
    %v344 = vunpack.c.h.b16 %v114
    %v345 = vunpack.c.l.b16 %v115
    %v346 = vunpack.c.h.b16 %v115
    %v347 = vunpack.c.l.b16 %v116
    %v348 = vunpack.c.h.b16 %v116
    %v349 = vunpack.c.l.b16 %v117
    %v350 = vunpack.c.h.b16 %v117
    %v351 = vunpack.c.l.b16 %v118
    %v352 = vunpack.c.h.b16 %v118
    %v353 = vunpack.c.l.b16 %v119
    %v354 = vunpack.c.h.b16 %v119
    %v355 = vunpack.c.l.b16 %v120
    %v356 = vunpack.c.h.b16 %v120
    %v357 = vunpack.c.l.b16 %v121
    %v358 = vunpack.c.h.b16 %v121
    %v359 = vunpack.c.l.b16 %v122
    %v360 = vunpack.c.h.b16 %v122
    %v361 = vunpack.c.l.b16 %v123
    %v362 = vunpack.c.h.b16 %v123
    %v363 = vunpack.c.l.b16 %v124
    %v364 = vunpack.c.h.b16 %v124
    %v365 = vunpack.c.l.b16 %v125
    %v366 = vunpack.c.h.b16 %v125
    %v367 = vunpack.c.l.b16 %v126
    %v368 = vunpack.c.h.b16 %v126
    %v369 = vunpack.c.l.b16 %v127
    %v370 = vunpack.c.h.b16 %v127
    %v371 = vpack.c.b16 %v219, %v217
    %v372 = vpack.c.b16 %v220, %v218
    %v373 = vpack.c.b16 %v223, %v221
    %v374 = vpack.c.b16 %v224, %v222
    %v375 = vpack.c.b16 %v227, %v225
    %v376 = vpack.c.b16 %v228, %v226
    %v377 = vpack.c.b16 %v231, %v229
    %v378 = vpack.c.b16 %v232, %v230
    %v379 = vpack.c.b16 %v235, %v233
    %v380 = vpack.c.b16 %v236, %v234
    %v381 = vpack.c.b16 %v239, %v237
    %v382 = vpack.c.b16 %v240, %v238
    %v383 = vpack.c.b16 %v243, %v241
    %v384 = vpack.c.b16 %v244, %v242
    %v385 = vpack.c.b16 %v247, %v245
    %v386 = vpack.c.b16 %v248, %v246
    %v387 = vpack.c.b16 %v251, %v249
    %v388 = vpack.c.b16 %v252, %v250
    %v389 = vpack.c.b16 %v255, %v253
    %v390 = vpack.c.b16 %v256, %v254
    %v391 = vpack.c.b16 %v259, %v257
    %v392 = vpack.c.b16 %v260, %v258
    %v393 = vpack.c.b16 %v263, %v261
    %v394 = vpack.c.b16 %v264, %v262
    %v395 = vpack.c.b16 %v267, %v265
    %v396 = vpack.c.b16 %v268, %v266
    %v397 = vpack.c.b16 %v271, %v269
    %v398 = vpack.c.b16 %v272, %v270
    %v399 = vpack.c.b16 %v275, %v273
    %v400 = vpack.c.b16 %v276, %v274
    %v401 = vpack.c.b16 %v279, %v277
    %v402 = vpack.c.b16 %v280, %v278
    %v403 = vpack.c.b16 %v283, %v281
    %v404 = vpack.c.b16 %v284, %v282
    %v405 = vpack.c.b16 %v287, %v285
    %v406 = vpack.c.b16 %v288, %v286
    %v407 = vpack.c.b16 %v291, %v289
    %v408 = vpack.c.b16 %v292, %v290
    %v409 = vpack.c.b16 %v295, %v293
    %v410 = vpack.c.b16 %v296, %v294
    %v411 = vpack.c.b16 %v299, %v297
    %v412 = vpack.c.b16 %v300, %v298
    %v413 = vpack.c.b16 %v303, %v301
    %v414 = vpack.c.b16 %v304, %v302
    %v415 = vpack.c.b16 %v307, %v305
    %v416 = vpack.c.b16 %v308, %v306
    %v417 = vpack.c.b16 %v311, %v309
    %v418 = vpack.c.b16 %v312, %v310
    %v419 = vpack.c.b16 %v315, %v313
    %v420 = vpack.c.b16 %v316, %v314
    %v421 = vpack.c.b16 %v319, %v317
    %v422 = vpack.c.b16 %v320, %v318
    %v423 = vpack.c.b16 %v323, %v321
    %v424 = vpack.c.b16 %v324, %v322
    %v425 = vpack.c.b16 %v327, %v325
    %v426 = vpack.c.b16 %v328, %v326
    %v427 = vpack.c.b16 %v331, %v329
    %v428 = vpack.c.b16 %v332, %v330
    %v429 = vpack.c.b16 %v335, %v333
    %v430 = vpack.c.b16 %v336, %v334
    %v431 = vpack.c.b16 %v339, %v337
    %v432 = vpack.c.b16 %v340, %v338
    %v433 = vpack.c.b16 %v343, %v341
    %v434 = vpack.c.b16 %v344, %v342
    %v435 = vpack.c.b16 %v347, %v345
    %v436 = vpack.c.b16 %v348, %v346
    %v437 = vpack.c.b16 %v351, %v349
    %v438 = vpack.c.b16 %v352, %v350
    %v439 = vpack.c.b16 %v355, %v353
    %v440 = vpack.c.b16 %v356, %v354
    %v441 = vpack.c.b16 %v359, %v357
    %v442 = vpack.c.b16 %v360, %v358
    %v443 = vpack.c.b16 %v363, %v361
    %v444 = vpack.c.b16 %v364, %v362
    %v445 = vpack.c.b16 %v367, %v365
    %v446 = vpack.c.b16 %v368, %v366
    %v447 = vpack.c.b16 %v369, %v369
    %v448 = vpack.c.b16 %v370, %v370
    %vm525 = vcmask 834560
    %v527 = vsel %vm525, %v50, 0
    %vm529 = vcmask 1042432
    %v531 = vsel %vm529, %v447, 0
    %v534 = vsel %vm529, %v448, 0
    %536 = vmatprep.subr.bf16.mxu0 %v386
    %537 = vmatpush1.bf16.msra.mxu0 %v385
    %538 = vmatprep.subr.bf16.mxu0 %v384
    %539 = vmatpush1.bf16.msra.mxu0 %v383
    %540 = vmatprep.subr.bf16.mxu0 %v382
    %541 = vmatpush1.bf16.msra.mxu0 %v381
    %542 = vmatprep.subr.bf16.mxu0 %v380
    %543 = vmatpush1.bf16.msra.mxu0 %v379
    %544 = vmatprep.subr.bf16.mxu0 %v378
    %545 = vmatpush1.bf16.msra.mxu0 %v377
    %546 = vmatprep.subr.bf16.mxu0 %v376
    %547 = vmatpush1.bf16.msra.mxu0 %v375
    %548 = vmatprep.subr.bf16.mxu0 %v374
    %549 = vmatpush1.bf16.msra.mxu0 %v373
    %550 = vmatprep.subr.bf16.mxu0 %v372
    %551 = vmatpush1.bf16.msra.mxu0 %v371
    %552 = vmatprep.subr.bf16.mxu0 %v402
    %553 = vmatpush2.bf16.msra.mxu0 %v401
    %554 = vmatprep.subr.bf16.mxu0 %v400
    %555 = vmatpush2.bf16.msra.mxu0 %v399
    %556 = vmatprep.subr.bf16.mxu0 %v398
    %557 = vmatpush2.bf16.msra.mxu0 %v397
    %558 = vmatprep.subr.bf16.mxu0 %v396
    %559 = vmatpush2.bf16.msra.mxu0 %v395
    %560 = vmatprep.subr.bf16.mxu0 %v394
    %561 = vmatpush2.bf16.msra.mxu0 %v393
    %562 = vmatprep.subr.bf16.mxu0 %v392
    %563 = vmatpush2.bf16.msra.mxu0 %v391
    %564 = vmatprep.subr.bf16.mxu0 %v390
    %565 = vmatpush2.bf16.msra.mxu0 %v389
    %566 = vmatprep.subr.bf16.mxu0 %v388
    %567 = vmatpush2.bf16.msra.mxu0 %v387
    %568 = vmatprep.mubr.bf16.mxu0 %v47
    %569 = vmatmul.mubr.bf16.gmra.mxu0 %v46
    %v570 = vpop.f32.mrf.mxu0
    %v571 = vadd.f32 %v133, %v570
    %v572 = vpop.f32.mrf.mxu0
    %v573 = vadd.f32 %v137, %v572
    %v574 = vpop.f32.mrf.mxu0
    %v575 = vpop.f32.mrf.mxu0
    %576 = vdwg.mxu0
    %577 = vmatprep.subr.bf16.mxu0 %v418
    %578 = vmatpush1.bf16.msra.mxu0 %v417
    %579 = vmatprep.subr.bf16.mxu0 %v416
    %580 = vmatpush1.bf16.msra.mxu0 %v415
    %581 = vmatprep.subr.bf16.mxu0 %v414
    %582 = vmatpush1.bf16.msra.mxu0 %v413
    %583 = vmatprep.subr.bf16.mxu0 %v412
    %584 = vmatpush1.bf16.msra.mxu0 %v411
    %585 = vmatprep.subr.bf16.mxu0 %v410
    %586 = vmatpush1.bf16.msra.mxu0 %v409
    %587 = vmatprep.subr.bf16.mxu0 %v408
    %588 = vmatpush1.bf16.msra.mxu0 %v407
    %589 = vmatprep.subr.bf16.mxu0 %v406
    %590 = vmatpush1.bf16.msra.mxu0 %v405
    %591 = vmatprep.subr.bf16.mxu0 %v404
    %592 = vmatpush1.bf16.msra.mxu0 %v403
    %593 = vmatprep.subr.bf16.mxu0 %v434
    %594 = vmatpush2.bf16.msra.mxu0 %v433
    %595 = vmatprep.subr.bf16.mxu0 %v432
    %596 = vmatpush2.bf16.msra.mxu0 %v431
    %597 = vmatprep.subr.bf16.mxu0 %v430
    %598 = vmatpush2.bf16.msra.mxu0 %v429
    %599 = vmatprep.subr.bf16.mxu0 %v428
    %600 = vmatpush2.bf16.msra.mxu0 %v427
    %601 = vmatprep.subr.bf16.mxu0 %v426
    %602 = vmatpush2.bf16.msra.mxu0 %v425
    %603 = vmatprep.subr.bf16.mxu0 %v424
    %604 = vmatpush2.bf16.msra.mxu0 %v423
    %605 = vmatprep.subr.bf16.mxu0 %v422
    %606 = vmatpush2.bf16.msra.mxu0 %v421
    %607 = vmatprep.subr.bf16.mxu0 %v420
    %608 = vmatpush2.bf16.msra.mxu0 %v419
    %609 = vmatprep.mubr.bf16.mxu0 %v49
    %610 = vmatmul.mubr.bf16.gmra.mxu0 %v48
    %v611 = vpop.f32.mrf.mxu0
    %v612 = vadd.f32 %v571, %v611
    %v613 = vpop.f32.mrf.mxu0
    %v614 = vadd.f32 %v573, %v613
    %v615 = vpop.f32.mrf.mxu0
    %v616 = vpop.f32.mrf.mxu0
    %617 = vdwg.mxu0
    %618 = vmatprep.subr.bf16.mxu0 0
    %619 = vmatpush1.bf16.msra.mxu0 0
    %620 = vmatprep.subr.bf16.mxu0 %v534
    %621 = vmatpush1.bf16.msra.mxu0 %v531
    %622 = vmatprep.subr.bf16.mxu0 %v446
    %623 = vmatpush1.bf16.msra.mxu0 %v445
    %624 = vmatprep.subr.bf16.mxu0 %v444
    %625 = vmatpush1.bf16.msra.mxu0 %v443
    %626 = vmatprep.subr.bf16.mxu0 %v442
    %627 = vmatpush1.bf16.msra.mxu0 %v441
    %628 = vmatprep.subr.bf16.mxu0 %v440
    %629 = vmatpush1.bf16.msra.mxu0 %v439
    %630 = vmatprep.subr.bf16.mxu0 %v438
    %631 = vmatpush1.bf16.msra.mxu0 %v437
    %632 = vmatprep.subr.bf16.mxu0 %v436
    %633 = vmatpush1.bf16.msra.mxu0 %v435
    %634 = vmatprep.subr.bf16.mxu0 0
    %635 = vmatpush2.bf16.msra.mxu0 0
    %636 = vmatprep.subr.bf16.mxu0 0
    %637 = vmatpush2.bf16.msra.mxu0 0
    %638 = vmatprep.subr.bf16.mxu0 0
    %639 = vmatpush2.bf16.msra.mxu0 0
    %640 = vmatprep.subr.bf16.mxu0 0
    %641 = vmatpush2.bf16.msra.mxu0 0
    %642 = vmatprep.subr.bf16.mxu0 0
    %643 = vmatpush2.bf16.msra.mxu0 0
    %644 = vmatprep.subr.bf16.mxu0 0
    %645 = vmatpush2.bf16.msra.mxu0 0
    %646 = vmatprep.subr.bf16.mxu0 0
    %647 = vmatpush2.bf16.msra.mxu0 0
    %648 = vmatprep.subr.bf16.mxu0 0
    %649 = vmatpush2.bf16.msra.mxu0 0
    %650 = vmatprep.mubr.bf16.mxu0 0
    %651 = vmatmul.mubr.bf16.gmra.mxu0 %v527
    %v652 = vpop.f32.mrf.mxu0
    %v653 = vadd.f32 %v612, %v652
    %v654 = vpop.f32.mrf.mxu0
    %v655 = vadd.f32 %v614, %v654
    %v656 = vpop.f32.mrf.mxu0
    %v657 = vpop.f32.mrf.mxu0
    %658 = vdwg.mxu0
    %v659 = vmax.f32 %v653, 0.0
    %v660 = vmax.f32 %v655, 0.0
    %v661 = vpack.c.bf16 %v659, %v659
    %v662 = vpack.c.bf16 %v660, %v660
    %v663 = vld [vmem:[%s3] sm:$0xf]
    %v664 = vld [vmem:[%s3 + $0x4] sm:$0xf]
    %v665 = vld [vmem:[%s3 + $0x8] sm:$0xf]
    %v666 = vld [vmem:[%s3 + $0xc] sm:$0xf]
    %v667 = vld [vmem:[%s3 + $0x10] sm:$0xf]
    %v668 = vld [vmem:[%s3 + $0x14] sm:$0xf]
    %v669 = vld [vmem:[%s3 + $0x18] sm:$0xf]
    %v670 = vld [vmem:[%s3 + $0x1c] sm:$0xf]
    %v671 = vld [vmem:[%s3 + $0x20] sm:$0xf]
    %v672 = vld [vmem:[%s3 + $0x24] sm:$0xf]
    %v673 = vld [vmem:[%s3 + $0x28] sm:$0xf]
    %v674 = vld [vmem:[%s3 + $0x2c] sm:$0xf]
    %v675 = vld [vmem:[%s3 + $0x30] sm:$0xf]
    %v676 = vld [vmem:[%s3 + $0x34] sm:$0xf]
    %v677 = vld [vmem:[%s3 + $0x38] sm:$0xf]
    %v678 = vld [vmem:[%s3 + $0x3c] sm:$0xf]
    %v679 = vld [vmem:[%s3 + $0x40] sm:$0xf]
    %v680 = vld [vmem:[%s3 + $0x44] sm:$0xf]
    %v681 = vld [vmem:[%s3 + $0x48] sm:$0xf]
    %v682 = vld [vmem:[%s3 + $0x4c] sm:$0xf]
    %v683 = vld [vmem:[%s3 + $0x50] sm:$0xf]
    %v684 = vld [vmem:[%s3 + $0x54] sm:$0xf]
    %v685 = vld [vmem:[%s3 + $0x58] sm:$0xf]
    %v686 = vld [vmem:[%s3 + $0x5c] sm:$0xf]
    %v687 = vld [vmem:[%s3 + $0x60] sm:$0xf]
    %v688 = vld [vmem:[%s3 + $0x64] sm:$0xf]
    %v689 = vld [vmem:[%s3 + $0x68] sm:$0xf]
    %v690 = vld [vmem:[%s3 + $0x6c] sm:$0xf]
    %v691 = vld [vmem:[%s3 + $0x70] sm:$0xf]
    %v692 = vld [vmem:[%s3 + $0x74] sm:$0xf]
    %v693 = vld [vmem:[%s3 + $0x78] sm:$0xf]
    %v694 = vld [vmem:[%s3 + $0x7c] sm:$0xf]
    %v695 = vld [vmem:[%s4] sm:$0x1]
    %v697 = vlaneseq
    %v698 = vshrl.u32 %v697, 7
    %v699 = vsub.s32 0, %v698
    %v700 = vrot.slane %v695, %v699
    %v734 = vunpack.c.l.b16 %v663
    %v735 = vunpack.c.l.b16 %v664
    %v736 = vunpack.c.l.b16 %v665
    %v737 = vunpack.c.l.b16 %v666
    %v738 = vunpack.c.l.b16 %v667
    %v739 = vunpack.c.l.b16 %v668
    %v740 = vunpack.c.l.b16 %v669
    %v741 = vunpack.c.l.b16 %v670
    %v742 = vunpack.c.l.b16 %v671
    %v743 = vunpack.c.l.b16 %v672
    %v744 = vunpack.c.l.b16 %v673
    %v745 = vunpack.c.l.b16 %v674
    %v746 = vunpack.c.l.b16 %v675
    %v747 = vunpack.c.l.b16 %v676
    %v748 = vunpack.c.l.b16 %v677
    %v749 = vunpack.c.l.b16 %v678
    %v750 = vunpack.c.l.b16 %v679
    %v751 = vunpack.c.l.b16 %v680
    %v752 = vunpack.c.l.b16 %v681
    %v753 = vunpack.c.l.b16 %v682
    %v754 = vunpack.c.l.b16 %v683
    %v755 = vunpack.c.l.b16 %v684
    %v756 = vunpack.c.l.b16 %v685
    %v757 = vunpack.c.l.b16 %v686
    %v758 = vunpack.c.l.b16 %v687
    %v759 = vunpack.c.l.b16 %v688
    %v760 = vunpack.c.l.b16 %v689
    %v761 = vunpack.c.l.b16 %v690
    %v762 = vunpack.c.l.b16 %v691
    %v763 = vunpack.c.l.b16 %v692
    %v764 = vunpack.c.l.b16 %v693
    %v765 = vunpack.c.l.b16 %v694
    %v766 = vpack.c.b16 %v735, %v734
    %v767 = vpack.c.b16 %v737, %v736
    %v768 = vpack.c.b16 %v739, %v738
    %v769 = vpack.c.b16 %v741, %v740
    %v770 = vpack.c.b16 %v743, %v742
    %v771 = vpack.c.b16 %v745, %v744
    %v772 = vpack.c.b16 %v747, %v746
    %v773 = vpack.c.b16 %v749, %v748
    %v774 = vpack.c.b16 %v751, %v750
    %v775 = vpack.c.b16 %v753, %v752
    %v776 = vpack.c.b16 %v755, %v754
    %v777 = vpack.c.b16 %v757, %v756
    %v778 = vpack.c.b16 %v759, %v758
    %v779 = vpack.c.b16 %v761, %v760
    %v780 = vpack.c.b16 %v763, %v762
    %v781 = vpack.c.b16 %v765, %v764
    %798 = vmatprep.subr.bf16.mxu0 0
    %799 = vmatpush1.bf16.msra.mxu0 %v773
    %800 = vmatprep.subr.bf16.mxu0 0
    %801 = vmatpush1.bf16.msra.mxu0 %v772
    %802 = vmatprep.subr.bf16.mxu0 0
    %803 = vmatpush1.bf16.msra.mxu0 %v771
    %804 = vmatprep.subr.bf16.mxu0 0
    %805 = vmatpush1.bf16.msra.mxu0 %v770
    %806 = vmatprep.subr.bf16.mxu0 0
    %807 = vmatpush1.bf16.msra.mxu0 %v769
    %808 = vmatprep.subr.bf16.mxu0 0
    %809 = vmatpush1.bf16.msra.mxu0 %v768
    %810 = vmatprep.subr.bf16.mxu0 0
    %811 = vmatpush1.bf16.msra.mxu0 %v767
    %812 = vmatprep.subr.bf16.mxu0 0
    %813 = vmatpush1.bf16.msra.mxu0 %v766
    %814 = vmatprep.subr.bf16.mxu0 0
    %815 = vmatpush2.bf16.msra.mxu0 %v781
    %816 = vmatprep.subr.bf16.mxu0 0
    %817 = vmatpush2.bf16.msra.mxu0 %v780
    %818 = vmatprep.subr.bf16.mxu0 0
    %819 = vmatpush2.bf16.msra.mxu0 %v779
    %820 = vmatprep.subr.bf16.mxu0 0
    %821 = vmatpush2.bf16.msra.mxu0 %v778
    %822 = vmatprep.subr.bf16.mxu0 0
    %823 = vmatpush2.bf16.msra.mxu0 %v777
    %824 = vmatprep.subr.bf16.mxu0 0
    %825 = vmatpush2.bf16.msra.mxu0 %v776
    %826 = vmatprep.subr.bf16.mxu0 0
    %827 = vmatpush2.bf16.msra.mxu0 %v775
    %828 = vmatprep.subr.bf16.mxu0 0
    %829 = vmatpush2.bf16.msra.mxu0 %v774
    %830 = vmatprep.mubr.bf16.mxu0 %v662
    %831 = vmatmul.mubr.bf16.gmra.mxu0 %v661
    %v832 = vpop.f32.mrf.mxu0
    %v833 = vadd.f32 %v700, %v832
    %v834 = vpop.f32.mrf.mxu0
    %v835 = vpop.f32.mrf.mxu0
    %v836 = vpop.f32.mrf.mxu0
    %837 = vdwg.mxu0
    %v838 = vmax.f32 %v833, 0.0
    %v839 = vpack.c.bf16 %v838, %v838
    %v840 = vld [vmem:[%s5] sm:$0xff]
    %v841 = vld [vmem:[%s5 + $0x8] sm:$0xf]
    %v842 = vld [vmem:[%s5 + $0xc] sm:$0xff]
    %v843 = vld [vmem:[%s5 + $0x14] sm:$0xf]
    %v844 = vld [vmem:[%s5 + $0x18] sm:$0xff]
    %v845 = vld [vmem:[%s5 + $0x20] sm:$0xf]
    %v846 = vld [vmem:[%s5 + $0x24] sm:$0xff]
    %v847 = vld [vmem:[%s5 + $0x2c] sm:$0xf]
    %v848 = vld [vmem:[%s5 + $0x30] sm:$0xff]
    %v849 = vld [vmem:[%s5 + $0x38] sm:$0xf]
    %v850 = vld [vmem:[%s5 + $0x3c] sm:$0xff]
    %v851 = vld [vmem:[%s5 + $0x44] sm:$0xf]
    %v852 = vld [vmem:[%s5 + $0x48] sm:$0xff]
    %v853 = vld [vmem:[%s5 + $0x50] sm:$0xf]
    %v854 = vld [vmem:[%s5 + $0x54] sm:$0xff]
    %v855 = vld [vmem:[%s5 + $0x5c] sm:$0xf]
    %v856 = vld [vmem:[%s5 + $0x60] sm:$0xff]
    %v857 = vld [vmem:[%s5 + $0x68] sm:$0xf]
    %v858 = vld [vmem:[%s5 + $0x6c] sm:$0xff]
    %v859 = vld [vmem:[%s5 + $0x74] sm:$0xf]
    %v860 = vld [vmem:[%s5 + $0x78] sm:$0xff]
    %v861 = vld [vmem:[%s5 + $0x80] sm:$0xf]
    %v862 = vld [vmem:[%s5 + $0x84] sm:$0xff]
    %v863 = vld [vmem:[%s5 + $0x8c] sm:$0xf]
    %v864 = vld [vmem:[%s5 + $0x90] sm:$0xff]
    %v865 = vld [vmem:[%s5 + $0x98] sm:$0xf]
    %v866 = vld [vmem:[%s5 + $0x9c] sm:$0xff]
    %v867 = vld [vmem:[%s5 + $0xa4] sm:$0xf]
    %v868 = vld [vmem:[%s5 + $0xa8] sm:$0xff]
    %v869 = vld [vmem:[%s5 + $0xb0] sm:$0xf]
    %v870 = vld [vmem:[%s5 + $0xb4] sm:$0xff]
    %v871 = vld [vmem:[%s5 + $0xbc] sm:$0xf]
    %v872 = vld [vmem:[%s6] sm:$0x7]
    %v874 = vlaneseq
    %v875 = vshrl.u32 %v874, 7
    %v876 = vsub.s32 0, %v875
    %v877 = vrot.slane %v872, %v876
    %v878 = vlaneseq
    %v879 = vshrl.u32 %v878, 7
    %v880 = vsub.s32 1, %v879
    %v881 = vrot.slane %v872, %v880
    %v882 = vlaneseq
    %v883 = vshrl.u32 %v882, 7
    %v884 = vsub.s32 2, %v883
    %v885 = vrot.slane %v872, %v884
    %v921 = vunpack.c.l.b16 %v840
    %v922 = vunpack.c.h.b16 %v840
    %v923 = vunpack.c.l.b16 %v841
    %v924 = vunpack.c.l.b16 %v842
    %v925 = vunpack.c.h.b16 %v842
    %v926 = vunpack.c.l.b16 %v843
    %v927 = vunpack.c.l.b16 %v844
    %v928 = vunpack.c.h.b16 %v844
    %v929 = vunpack.c.l.b16 %v845
    %v930 = vunpack.c.l.b16 %v846
    %v931 = vunpack.c.h.b16 %v846
    %v932 = vunpack.c.l.b16 %v847
    %v933 = vunpack.c.l.b16 %v848
    %v934 = vunpack.c.h.b16 %v848
    %v935 = vunpack.c.l.b16 %v849
    %v936 = vunpack.c.l.b16 %v850
    %v937 = vunpack.c.h.b16 %v850
    %v938 = vunpack.c.l.b16 %v851
    %v939 = vunpack.c.l.b16 %v852
    %v940 = vunpack.c.h.b16 %v852
    %v941 = vunpack.c.l.b16 %v853
    %v942 = vunpack.c.l.b16 %v854
    %v943 = vunpack.c.h.b16 %v854
    %v944 = vunpack.c.l.b16 %v855
    %v945 = vunpack.c.l.b16 %v856
    %v946 = vunpack.c.h.b16 %v856
    %v947 = vunpack.c.l.b16 %v857
    %v948 = vunpack.c.l.b16 %v858
    %v949 = vunpack.c.h.b16 %v858
    %v950 = vunpack.c.l.b16 %v859
    %v951 = vunpack.c.l.b16 %v860
    %v952 = vunpack.c.h.b16 %v860
    %v953 = vunpack.c.l.b16 %v861
    %v954 = vunpack.c.l.b16 %v862
    %v955 = vunpack.c.h.b16 %v862
    %v956 = vunpack.c.l.b16 %v863
    %v957 = vunpack.c.l.b16 %v864
    %v958 = vunpack.c.h.b16 %v864
    %v959 = vunpack.c.l.b16 %v865
    %v960 = vunpack.c.l.b16 %v866
    %v961 = vunpack.c.h.b16 %v866
    %v962 = vunpack.c.l.b16 %v867
    %v963 = vunpack.c.l.b16 %v868
    %v964 = vunpack.c.h.b16 %v868
    %v965 = vunpack.c.l.b16 %v869
    %v966 = vunpack.c.l.b16 %v870
    %v967 = vunpack.c.h.b16 %v870
    %v968 = vunpack.c.l.b16 %v871
    %v969 = vpack.c.b16 %v924, %v921
    %v970 = vpack.c.b16 %v925, %v922
    %v971 = vpack.c.b16 %v926, %v923
    %v972 = vpack.c.b16 %v930, %v927
    %v973 = vpack.c.b16 %v931, %v928
    %v974 = vpack.c.b16 %v932, %v929
    %v975 = vpack.c.b16 %v936, %v933
    %v976 = vpack.c.b16 %v937, %v934
    %v977 = vpack.c.b16 %v938, %v935
    %v978 = vpack.c.b16 %v942, %v939
    %v979 = vpack.c.b16 %v943, %v940
    %v980 = vpack.c.b16 %v944, %v941
    %v981 = vpack.c.b16 %v948, %v945
    %v982 = vpack.c.b16 %v949, %v946
    %v983 = vpack.c.b16 %v950, %v947
    %v984 = vpack.c.b16 %v954, %v951
    %v985 = vpack.c.b16 %v955, %v952
    %v986 = vpack.c.b16 %v956, %v953
    %v987 = vpack.c.b16 %v960, %v957
    %v988 = vpack.c.b16 %v961, %v958
    %v989 = vpack.c.b16 %v962, %v959
    %v990 = vpack.c.b16 %v966, %v963
    %v991 = vpack.c.b16 %v967, %v964
    %v992 = vpack.c.b16 %v968, %v965
    %1017 = vmatprep.subr.bf16.mxu0 %v991
    %1018 = vmatpush1.bf16.msra.mxu0 %v990
    %1019 = vmatprep.subr.bf16.mxu0 %v988
    %1020 = vmatpush1.bf16.msra.mxu0 %v987
    %1021 = vmatprep.subr.bf16.mxu0 %v985
    %1022 = vmatpush1.bf16.msra.mxu0 %v984
    %1023 = vmatprep.subr.bf16.mxu0 %v982
    %1024 = vmatpush1.bf16.msra.mxu0 %v981
    %1025 = vmatprep.subr.bf16.mxu0 %v979
    %1026 = vmatpush1.bf16.msra.mxu0 %v978
    %1027 = vmatprep.subr.bf16.mxu0 %v976
    %1028 = vmatpush1.bf16.msra.mxu0 %v975
    %1029 = vmatprep.subr.bf16.mxu0 %v973
    %1030 = vmatpush1.bf16.msra.mxu0 %v972
    %1031 = vmatprep.subr.bf16.mxu0 %v970
    %1032 = vmatpush1.bf16.msra.mxu0 %v969
    %1033 = vmatprep.subr.bf16.mxu0 0
    %1034 = vmatpush2.bf16.msra.mxu0 0
    %1035 = vmatprep.subr.bf16.mxu0 0
    %1036 = vmatpush2.bf16.msra.mxu0 0
    %1037 = vmatprep.subr.bf16.mxu0 0
    %1038 = vmatpush2.bf16.msra.mxu0 0
    %1039 = vmatprep.subr.bf16.mxu0 0
    %1040 = vmatpush2.bf16.msra.mxu0 0
    %1041 = vmatprep.subr.bf16.mxu0 0
    %1042 = vmatpush2.bf16.msra.mxu0 0
    %1043 = vmatprep.subr.bf16.mxu0 0
    %1044 = vmatpush2.bf16.msra.mxu0 0
    %1045 = vmatprep.subr.bf16.mxu0 0
    %1046 = vmatpush2.bf16.msra.mxu0 0
    %1047 = vmatprep.subr.bf16.mxu0 0
    %1048 = vmatpush2.bf16.msra.mxu0 0
    %1049 = vmatprep.mubr.bf16.mxu0 0
    %1050 = vmatmul.mubr.bf16.gmra.mxu0 %v839
    %v1051 = vpop.f32.mrf.mxu0
    %v1052 = vadd.f32 %v877, %v1051
    %v1053 = vpop.f32.mrf.mxu0
    %v1054 = vadd.f32 %v881, %v1053
    %v1055 = vpop.f32.mrf.mxu0
    %v1056 = vpop.f32.mrf.mxu0
    %1057 = vdwg.mxu0
    %1058 = vmatprep.subr.bf16.mxu0 0
    %1059 = vmatpush1.bf16.msra.mxu0 %v992
    %1060 = vmatprep.subr.bf16.mxu0 0
    %1061 = vmatpush1.bf16.msra.mxu0 %v989
    %1062 = vmatprep.subr.bf16.mxu0 0
    %1063 = vmatpush1.bf16.msra.mxu0 %v986
    %1064 = vmatprep.subr.bf16.mxu0 0
    %1065 = vmatpush1.bf16.msra.mxu0 %v983
    %1066 = vmatprep.subr.bf16.mxu0 0
    %1067 = vmatpush1.bf16.msra.mxu0 %v980
    %1068 = vmatprep.subr.bf16.mxu0 0
    %1069 = vmatpush1.bf16.msra.mxu0 %v977
    %1070 = vmatprep.subr.bf16.mxu0 0
    %1071 = vmatpush1.bf16.msra.mxu0 %v974
    %1072 = vmatprep.subr.bf16.mxu0 0
    %1073 = vmatpush1.bf16.msra.mxu0 %v971
    %1074 = vmatprep.subr.bf16.mxu0 0
    %1075 = vmatpush2.bf16.msra.mxu0 0
    %1076 = vmatprep.subr.bf16.mxu0 0
    %1077 = vmatpush2.bf16.msra.mxu0 0
    %1078 = vmatprep.subr.bf16.mxu0 0
    %1079 = vmatpush2.bf16.msra.mxu0 0
    %1080 = vmatprep.subr.bf16.mxu0 0
    %1081 = vmatpush2.bf16.msra.mxu0 0
    %1082 = vmatprep.subr.bf16.mxu0 0
    %1083 = vmatpush2.bf16.msra.mxu0 0
    %1084 = vmatprep.subr.bf16.mxu0 0
    %1085 = vmatpush2.bf16.msra.mxu0 0
    %1086 = vmatprep.subr.bf16.mxu0 0
    %1087 = vmatpush2.bf16.msra.mxu0 0
    %1088 = vmatprep.subr.bf16.mxu0 0
    %1089 = vmatpush2.bf16.msra.mxu0 0
    %1090 = vmatprep.mubr.bf16.mxu0 0
    %1091 = vmatmul.mubr.bf16.gmra.mxu0 %v839
    %v1092 = vpop.f32.mrf.mxu0
    %v1093 = vadd.f32 %v885, %v1092
    %v1094 = vpop.f32.mrf.mxu0
    %v1095 = vpop.f32.mrf.mxu0
    %v1096 = vpop.f32.mrf.mxu0
    %1097 = vdwg.mxu0
    %1098 = vst [vmem:[%s7] sm:$0xff] %v1052
    %1099 = vst [vmem:[%s7 + $0x8] sm:$0xff] %v1054
    %vm1100 = vcmask 277504
    %1101 = vst.msk [vmem:[%s7 + $0x10] sm:$0xff] %vm1100, %v1093
    // Predicated region
    $region34: #{dqn_forward.1} parent=1 // pred_check
      _
    $region35: #{dqn_forward.1} parent=1 // pred_check_branch
      %1103 = sbr.rel (0) target = $region37
    $region36: #{dqn_forward.1} parent=1 // pred_region
      _
    $region37: #{dqn_forward.1} parent=1 // pred_fallthru
      _
    // Predicated region
    $region38: #{dqn_forward.1} parent=1 // pred_check
      _
    $region39: #{dqn_forward.1} parent=1 // pred_check_branch
      %1105 = sbr.rel (0) target = $region41
    $region40: #{dqn_forward.1} parent=1 // pred_region
      _
    $region41: #{dqn_forward.1} parent=1 // pred_fallthru
      _
    %1106 = vsyncpa [#allocation3], 1

</llo_original>
